<compile_context>
chip_gen: v5e
topology: v5e:2x2
jax: 0.10.0
libtpu: 0.0.40
codegen_flags: <defaults>
</compile_context>

<pallas_src>
import jax
import jax.numpy as jnp
from jax import lax
from jax.experimental import pallas as pl
from jax.experimental.pallas import tpu as pltpu

EPS = 1e-8      # torch.cosine_similarity default eps
HIDDEN = 10     # Net's fixed hidden width
NUM_LAYERS = 3


def _round_up(n, m):
    return ((n + m - 1) // m) * m


def _make_net_kernel(pad):
    """Kernel over one batch tile.
    x_ref: (bm, pad) f32, pack_ref: (3, pad+8, pad) f32, o_ref: (bm, pad) f32."""

    def kernel(x_ref, pack_ref, o_ref):
        h = x_ref[...]                                          # (bm, pad) f32
        for l in range(NUM_LAYERS):                             # statically unrolled
            slab = pack_ref[l]                                  # (pad+8, pad)
            w = slab[:pad, :]                                   # zero-padded (out,in) weight
            w_sq = slab[pad:pad + 1, :]                         # (1, pad) precomputed ||w_r||^2
            x_sq = jnp.sum(h * h, axis=-1, keepdims=True)       # (bm, 1)
            dot = lax.dot_general(h, w, (((1,), (1,)), ((), ())),
                                  preferred_element_type=jnp.float32)   # h @ w.T -> (bm, pad)
            # cos = dot / max(||w||*||x||, eps) = dot * rsqrt(max(w_sq*x_sq, eps^2))
            h = dot * lax.rsqrt(jnp.maximum(w_sq * x_sq, EPS * EPS))
        o_ref[...] = h

    return kernel


def _pack_params(w1, w2, w3, pad):
    """Single (3, pad+8, pad) f32 slab: per layer, rows[:pad] = zero-padded weight,
    row[pad] = per-row squared norms (zero for padded rows)."""
    slabs = []
    for w in (w1, w2, w3):
        w = w.astype(jnp.float32)
        o, i = w.shape
        wp = jnp.zeros((pad, pad), jnp.float32).at[:o, :i].set(w)
        sq = jnp.zeros((8, pad), jnp.float32).at[0, :o].set(jnp.sum(w * w, axis=1))
        slabs.append(jnp.concatenate([wp, sq], axis=0))         # (pad+8, pad)
    return jnp.stack(slabs, axis=0)                             # (3, pad+8, pad)


def net_forward(x, w1, w2, w3, *, block_b=128):
    """x: (input_size,) or (B, input_size) -> (output_size,) or (B, output_size)."""
    input_size = w1.shape[1]
    output_size = w3.shape[0]
    pad = _round_up(max(input_size, HIDDEN, output_size), 8)

    squeeze = x.ndim == 1
    x2d = (x.reshape(1, -1) if squeeze else x).astype(jnp.float32)
    B = x2d.shape[0]

    bm = min(block_b, _round_up(B, 8))          # batch tile (sublane-aligned)
    Bp = _round_up(B, bm)
    xp = jnp.zeros((Bp, pad), jnp.float32).at[:B, :input_size].set(x2d)
    pack = _pack_params(w1, w2, w3, pad)

    out = pl.pallas_call(
        _make_net_kernel(pad),
        out_shape=jax.ShapeDtypeStruct((Bp, pad), jnp.float32),
        grid=(Bp // bm,),
        in_specs=[
            pl.BlockSpec((bm, pad), lambda i: (i, 0)),               # batch tile of x
            pl.BlockSpec((3, pad + 8, pad), lambda i: (0, 0, 0)),    # packed weights+norms (resident)
        ],
        out_specs=pl.BlockSpec((bm, pad), lambda i: (i, 0)),
        compiler_params=pltpu.CompilerParams(dimension_semantics=("parallel",)),
    )(xp, pack)

    out = out[:B, :output_size]
    return out[0] if squeeze else out


# ---------------- pure-JAX reference (torch.cosine_similarity semantics) ----------------
def _cos_sim_ref(w, x):
    dot = x @ w.T
    denom = jnp.maximum(jnp.linalg.norm(w, axis=1) * jnp.linalg.norm(x), EPS)
    return dot / denom


def net_ref(x, w1, w2, w3):
    h = _cos_sim_ref(w1, x)
    h = _cos_sim_ref(w2, h)
    return _cos_sim_ref(w3, h)


if __name__ == "__main__":
    input_size, output_size, batch = 16, 8, 8

    key = jax.random.PRNGKey(0)
    k1, k2, k3, kx = jax.random.split(key, 4)
    # "torch.randn"-style parameter init, shapes from Mem.__init__
    w1 = jax.random.normal(k1, (10, input_size), jnp.float32)    # layer1.param
    w2 = jax.random.normal(k2, (10, 10), jnp.float32)            # layer2.param
    w3 = jax.random.normal(k3, (output_size, 10), jnp.float32)   # layer3.param
    x = jax.random.normal(kx, (batch, input_size), jnp.float32)

    # batched forward (each row is an independent sample)
    y = net_forward(x, w1, w2, w3)
    jax.block_until_ready(y)
    assert y.shape == (batch, output_size)

    y_ref = jax.vmap(lambda xi: net_ref(xi, w1, w2, w3))(x)
    assert jnp.allclose(y, y_ref, atol=1e-5, rtol=1e-5), (y, y_ref)

    # single-vector path, matching the original Net.forward signature
    y1 = net_forward(x[0], w1, w2, w3)
    jax.block_until_ready(y1)
    assert y1.shape == (output_size,)
    assert jnp.allclose(y1, y_ref[0], atol=1e-5, rtol=1e-5), (y1, y_ref[0])

    print("KERNEL_OK")
</pallas_src>

<mosaic_0001>
module attributes {stable_mosaic.version = 11 : i64} {
  func.func @kernel(%arg0: i32, %arg1: memref<8x16xf32, #tpu.memory_space<vmem>>, %arg2: memref<3x24x16xf32, #tpu.memory_space<vmem>>, %arg3: memref<8x16xf32, #tpu.memory_space<vmem>>) attributes {dimension_semantics = [#tpu.dimension_semantics<parallel>], iteration_bounds = array<i64: 1>, scalar_prefetch = 0 : i64, scratch_operands = 0 : i64, tpu.core_type = #tpu.core_type<tc>, window_params = [{transform_indices = @transform_0, window_bounds = array<i64: 8, 16>}, {pipeline_mode = #tpu.pipeline_mode<synchronous>, transform_indices = @transform_1, window_bounds = array<i64: 3, 24, 16>}, {transform_indices = @transform_2, window_bounds = array<i64: 8, 16>}]} {
    %c0 = arith.constant 0 : index
    %c0_0 = arith.constant 0 : index
    %0 = vector.load %arg1[%c0, %c0_0] : memref<8x16xf32, #tpu.memory_space<vmem>>, vector<8x16xf32>
    %c0_1 = arith.constant 0 : index
    %c0_2 = arith.constant 0 : index
    %c0_3 = arith.constant 0 : index
    %1 = vector.load %arg2[%c0_1, %c0_2, %c0_3] : memref<3x24x16xf32, #tpu.memory_space<vmem>>, vector<1x24x16xf32>
    %2 = vector.shape_cast %1 : vector<1x24x16xf32> to vector<24x16xf32>
    %3 = vector.extract_strided_slice %2 {offsets = [0, 0], sizes = [16, 16], strides = [1, 1]} : vector<24x16xf32> to vector<16x16xf32>
    %4 = vector.extract_strided_slice %2 {offsets = [16, 0], sizes = [1, 16], strides = [1, 1]} : vector<24x16xf32> to vector<1x16xf32>
    %5 = arith.mulf %0, %0 : vector<8x16xf32>
    %cst = arith.constant dense<0.000000e+00> : vector<8xf32>
    %6 = vector.multi_reduction <add>, %5, %cst [1] : vector<8x16xf32> to vector<8xf32>
    %7 = vector.shape_cast %6 : vector<8xf32> to vector<8x1xf32>
    %cst_4 = arith.constant dense<0.000000e+00> : vector<8x16xf32>
    %8 = tpu.matmul %0, %3, %cst_4 {dimension_numbers = #tpu.dot_dimension_numbers<[1], [1], [0], [0], [0, 0, 1, 0], [], []>} : vector<8x16xf32>, vector<16x16xf32>, vector<8x16xf32> -> vector<8x16xf32>
    %9 = vector.broadcast %4 : vector<1x16xf32> to vector<8x16xf32>
    %10 = vector.broadcast %7 : vector<8x1xf32> to vector<8x16xf32>
    %11 = arith.mulf %9, %10 : vector<8x16xf32>
    %cst_5 = arith.constant 1.000000e-16 : f32
    %12 = vector.broadcast %cst_5 : f32 to vector<8x16xf32>
    %13 = arith.maximumf %11, %12 : vector<8x16xf32>
    %14 = math.rsqrt %13 : vector<8x16xf32>
    %15 = arith.mulf %8, %14 : vector<8x16xf32>
    %c1 = arith.constant 1 : index
    %c0_6 = arith.constant 0 : index
    %c0_7 = arith.constant 0 : index
    %16 = vector.load %arg2[%c1, %c0_6, %c0_7] : memref<3x24x16xf32, #tpu.memory_space<vmem>>, vector<1x24x16xf32>
    %17 = vector.shape_cast %16 : vector<1x24x16xf32> to vector<24x16xf32>
    %18 = vector.extract_strided_slice %17 {offsets = [0, 0], sizes = [16, 16], strides = [1, 1]} : vector<24x16xf32> to vector<16x16xf32>
    %19 = vector.extract_strided_slice %17 {offsets = [16, 0], sizes = [1, 16], strides = [1, 1]} : vector<24x16xf32> to vector<1x16xf32>
    %20 = arith.mulf %15, %15 : vector<8x16xf32>
    %cst_8 = arith.constant dense<0.000000e+00> : vector<8xf32>
    %21 = vector.multi_reduction <add>, %20, %cst_8 [1] : vector<8x16xf32> to vector<8xf32>
    %22 = vector.shape_cast %21 : vector<8xf32> to vector<8x1xf32>
    %cst_9 = arith.constant dense<0.000000e+00> : vector<8x16xf32>
    %23 = tpu.matmul %15, %18, %cst_9 {dimension_numbers = #tpu.dot_dimension_numbers<[1], [1], [0], [0], [0, 0, 1, 0], [], []>} : vector<8x16xf32>, vector<16x16xf32>, vector<8x16xf32> -> vector<8x16xf32>
    %24 = vector.broadcast %19 : vector<1x16xf32> to vector<8x16xf32>
    %25 = vector.broadcast %22 : vector<8x1xf32> to vector<8x16xf32>
    %26 = arith.mulf %24, %25 : vector<8x16xf32>
    %cst_10 = arith.constant 1.000000e-16 : f32
    %27 = vector.broadcast %cst_10 : f32 to vector<8x16xf32>
    %28 = arith.maximumf %26, %27 : vector<8x16xf32>
    %29 = math.rsqrt %28 : vector<8x16xf32>
    %30 = arith.mulf %23, %29 : vector<8x16xf32>
    %c2 = arith.constant 2 : index
    %c0_11 = arith.constant 0 : index
    %c0_12 = arith.constant 0 : index
    %31 = vector.load %arg2[%c2, %c0_11, %c0_12] : memref<3x24x16xf32, #tpu.memory_space<vmem>>, vector<1x24x16xf32>
    %32 = vector.shape_cast %31 : vector<1x24x16xf32> to vector<24x16xf32>
    %33 = vector.extract_strided_slice %32 {offsets = [0, 0], sizes = [16, 16], strides = [1, 1]} : vector<24x16xf32> to vector<16x16xf32>
    %34 = vector.extract_strided_slice %32 {offsets = [16, 0], sizes = [1, 16], strides = [1, 1]} : vector<24x16xf32> to vector<1x16xf32>
    %35 = arith.mulf %30, %30 : vector<8x16xf32>
    %cst_13 = arith.constant dense<0.000000e+00> : vector<8xf32>
    %36 = vector.multi_reduction <add>, %35, %cst_13 [1] : vector<8x16xf32> to vector<8xf32>
    %37 = vector.shape_cast %36 : vector<8xf32> to vector<8x1xf32>
    %cst_14 = arith.constant dense<0.000000e+00> : vector<8x16xf32>
    %38 = tpu.matmul %30, %33, %cst_14 {dimension_numbers = #tpu.dot_dimension_numbers<[1], [1], [0], [0], [0, 0, 1, 0], [], []>} : vector<8x16xf32>, vector<16x16xf32>, vector<8x16xf32> -> vector<8x16xf32>
    %39 = vector.broadcast %34 : vector<1x16xf32> to vector<8x16xf32>
    %40 = vector.broadcast %37 : vector<8x1xf32> to vector<8x16xf32>
    %41 = arith.mulf %39, %40 : vector<8x16xf32>
    %cst_15 = arith.constant 1.000000e-16 : f32
    %42 = vector.broadcast %cst_15 : f32 to vector<8x16xf32>
    %43 = arith.maximumf %41, %42 : vector<8x16xf32>
    %44 = math.rsqrt %43 : vector<8x16xf32>
    %45 = arith.mulf %38, %44 : vector<8x16xf32>
    %c0_16 = arith.constant 0 : index
    %c0_17 = arith.constant 0 : index
    %46 = vector.load %arg3[%c0_16, %c0_17] : memref<8x16xf32, #tpu.memory_space<vmem>>, vector<8x16xf32>
    tpu.vector_store %arg3[%c0_16, %c0_17], %45 {strides = array<i32>} : memref<8x16xf32, #tpu.memory_space<vmem>>, vector<8x16xf32>,
    return
  }
  func.func @transform_0(%arg0: i32) -> (i32, i32) {
    %c0_i32 = arith.constant 0 : i32
    %c0_i32_0 = arith.constant 0 : i32
    return %arg0, %c0_i32 : i32, i32
  }
  func.func @transform_1(%arg0: i32) -> (i32, i32, i32) {
    %c0_i32 = arith.constant 0 : i32
    %c0_i32_0 = arith.constant 0 : i32
    %c0_i32_1 = arith.constant 0 : i32
    %c0_i32_2 = arith.constant 0 : i32
    return %c0_i32, %c0_i32_0, %c0_i32_1 : i32, i32, i32
  }
  func.func @transform_2(%arg0: i32) -> (i32, i32) {
    %c0_i32 = arith.constant 0 : i32
    %c0_i32_0 = arith.constant 0 : i32
    return %arg0, %c0_i32 : i32, i32
  }
}

</mosaic_0001>

<llo_original>
// kernel: tpu_custom_call.1
$region0: #{tpu_custom_call.1}
  #allocation0 [shape = 'u32[]', space=smem, size = 0x4, offset = 0x4, fixed_abs, tag = 'smem constant byte address 0x4 - core index']
  #allocation1 [shape = 'u32[72,128]{1,0:T(1,128)}', space=vmem, size = 0x9000, scoped, tag = 'internal scratch']
  %s0 = inlined_call_operand.vmem [shape: f32[8,16], index: 0, kind: input, shape index: {}]
  %s1 = inlined_call_operand.vmem [shape: f32[3,24,16], index: 1, kind: input, shape index: {}]
  %s2 = inlined_call_operand.hbm [shape: f32[8,16], index: 2, kind: output, shape index: {}]
  %s3 = sld [smem:[#allocation0]]
  $region18: #{tpu_custom_call.1} parent=0
    _
  %s5 = ssub.s32 1, %s3
  %s6 = scalar_select 0, %s5, %s3
  $region1: #{tpu_custom_call.1} parent=0
    #allocation2 [shape = 'u8[4096]{0}', space=vmem, size = 0x1000, scoped, tag = 'output window, operand 0, single buffered']
    #allocation3 [shape = 's32[1]{0}', space=sflag, size = 0x4, scoped, tag = 'scoped memory for tpu_custom_call.1']
    %7 = vsyncpa [#allocation3], 0
    // Predicated region
    $region2: #{tpu_custom_call.1} parent=1 // pred_check
      _
    $region3: #{tpu_custom_call.1} parent=1 // pred_check_branch
      %9 = sbr.rel (0) target = $region5
    $region4: #{tpu_custom_call.1} parent=1 // pred_region
      _
    $region5: #{tpu_custom_call.1} parent=1 // pred_fallthru
      _
    // Predicated region
    $region6: #{tpu_custom_call.1} parent=1 // pred_check
      _
    $region7: #{tpu_custom_call.1} parent=1 // pred_check_branch
      %11 = sbr.rel (0) target = $region9
    $region8: #{tpu_custom_call.1} parent=1 // pred_region
      _
    $region9: #{tpu_custom_call.1} parent=1 // pred_fallthru
      _
    %v12 = vld [vmem:[%s0] sm:$0xff]
    %v13 = vld [vmem:[%s1] sm:$0xff]
    %v14 = vld [vmem:[%s1 + $0x8] sm:$0xff]
    %v15 = vld [vmem:[%s1 + $0x10] sm:$0xff]
    %v16 = vmul.f32 %v12, %v12
    %vm17 = vcmask 130048
    %v18 = vsel %vm17, %v16, 0.0
    %19 = vadd.xlane.f32.xlu0 %v18
    %v20 = vpop.xlane.xlu0 %19
    %v22 = vsel %vm17, %v12, 0
    %v25 = vsel %vm17, %v13, 0
    %v28 = vsel %vm17, %v14, 0
    %30 = vmatpush.xpose.msra.mxu0 0.0
    %31 = vmatpush.xpose.msra.mxu0 0.0
    %32 = vmatpush.xpose.msra.mxu0 0.0
    %33 = vmatpush.xpose.msra.mxu0 0.0
    %34 = vmatpush.xpose.msra.mxu0 0.0
    %35 = vmatpush.xpose.msra.mxu0 0.0
    %36 = vmatpush.xpose.msra.mxu0 0.0
    %37 = vmatpush.xpose.msra.mxu0 0.0
    %38 = vmatpush.xpose.msra.mxu0 0.0
    %39 = vmatpush.xpose.msra.mxu0 0.0
    %40 = vmatpush.xpose.msra.mxu0 0.0
    %41 = vmatpush.xpose.msra.mxu0 0.0
    %42 = vmatpush.xpose.msra.mxu0 0.0
    %43 = vmatpush.xpose.msra.mxu0 0.0
    %44 = vmatpush.xpose.msra.mxu0 %v28
    %45 = vmatpush.xpose.msra.mxu0 %v25
    %46 = vmatmul.f32.gmra.mxu0 %v22
    %v47 = vpop.f32.mrf.mxu0
    %v48 = vadd.f32 0.0, %v47
    %49 = vdwg.mxu0
    %v50 = vperm.slane %v15, 0
    %v51 = vmul.f32 %v50, %v20
    %v52 = vmax.f32 %v51, 1e-16
    %v53 = vrsqrt.pop %v52
    %v54 = vmul.f32 %v53, %v52
    %v55 = vmul.f32 %v54, %v53
    %v56 = vmul.f32 0.5, %v55
    %v57 = vsub.f32 1.5, %v56
    %v58 = vmul.f32 %v53, %v57
    %vm59 = vweird.f32 %v52
    %vm60 = vweird.f32 %v53
    %vm61 = vmor %vm59, %vm60
    %v62 = vsel %vm61, %v53, %v58
    %v63 = vmul.f32 %v48, %v62
    %s64 = scalar_lea.vmem %s1, 24
    %v65 = vld [vmem:[%s64] sm:$0xff]
    %v66 = vld [vmem:[%s64 + $0x8] sm:$0xff]
    %v67 = vld [vmem:[%s64 + $0x10] sm:$0xff]
    %v68 = vmul.f32 %v63, %v63
    %v69 = vsel %vm17, %v68, 0.0
    %70 = vadd.xlane.f32.xlu0 %v69
    %v71 = vpop.xlane.xlu0 %70
    %v73 = vsel %vm17, %v63, 0
    %v76 = vsel %vm17, %v65, 0
    %v79 = vsel %vm17, %v66, 0
    %81 = vmatpush.xpose.msra.mxu0 0.0
    %82 = vmatpush.xpose.msra.mxu0 0.0
    %83 = vmatpush.xpose.msra.mxu0 0.0
    %84 = vmatpush.xpose.msra.mxu0 0.0
    %85 = vmatpush.xpose.msra.mxu0 0.0
    %86 = vmatpush.xpose.msra.mxu0 0.0
    %87 = vmatpush.xpose.msra.mxu0 0.0
    %88 = vmatpush.xpose.msra.mxu0 0.0
    %89 = vmatpush.xpose.msra.mxu0 0.0
    %90 = vmatpush.xpose.msra.mxu0 0.0
    %91 = vmatpush.xpose.msra.mxu0 0.0
    %92 = vmatpush.xpose.msra.mxu0 0.0
    %93 = vmatpush.xpose.msra.mxu0 0.0
    %94 = vmatpush.xpose.msra.mxu0 0.0
    %95 = vmatpush.xpose.msra.mxu0 %v79
    %96 = vmatpush.xpose.msra.mxu0 %v76
    %97 = vmatmul.f32.gmra.mxu0 %v73
    %v98 = vpop.f32.mrf.mxu0
    %v99 = vadd.f32 0.0, %v98
    %100 = vdwg.mxu0
    %v101 = vperm.slane %v67, 0
    %v102 = vmul.f32 %v101, %v71
    %v103 = vmax.f32 %v102, 1e-16
    %v104 = vrsqrt.pop %v103
    %v105 = vmul.f32 %v104, %v103
    %v106 = vmul.f32 %v105, %v104
    %v107 = vmul.f32 0.5, %v106
    %v108 = vsub.f32 1.5, %v107
    %v109 = vmul.f32 %v104, %v108
    %vm110 = vweird.f32 %v103
    %vm111 = vweird.f32 %v104
    %vm112 = vmor %vm110, %vm111
    %v113 = vsel %vm112, %v104, %v109
    %v114 = vmul.f32 %v99, %v113
    %s115 = scalar_lea.vmem %s1, 48
    %v116 = vld [vmem:[%s115] sm:$0xff]
    %v117 = vld [vmem:[%s115 + $0x8] sm:$0xff]
    %v118 = vld [vmem:[%s115 + $0x10] sm:$0xff]
    %v119 = vmul.f32 %v114, %v114
    %v120 = vsel %vm17, %v119, 0.0
    %121 = vadd.xlane.f32.xlu0 %v120
    %v122 = vpop.xlane.xlu0 %121
    %v124 = vsel %vm17, %v114, 0
    %v127 = vsel %vm17, %v116, 0
    %v130 = vsel %vm17, %v117, 0
    %132 = vmatpush.xpose.msra.mxu0 0.0
    %133 = vmatpush.xpose.msra.mxu0 0.0
    %134 = vmatpush.xpose.msra.mxu0 0.0
    %135 = vmatpush.xpose.msra.mxu0 0.0
    %136 = vmatpush.xpose.msra.mxu0 0.0
    %137 = vmatpush.xpose.msra.mxu0 0.0
    %138 = vmatpush.xpose.msra.mxu0 0.0
    %139 = vmatpush.xpose.msra.mxu0 0.0
    %140 = vmatpush.xpose.msra.mxu0 0.0
    %141 = vmatpush.xpose.msra.mxu0 0.0
    %142 = vmatpush.xpose.msra.mxu0 0.0
    %143 = vmatpush.xpose.msra.mxu0 0.0
    %144 = vmatpush.xpose.msra.mxu0 0.0
    %145 = vmatpush.xpose.msra.mxu0 0.0
    %146 = vmatpush.xpose.msra.mxu0 %v130
    %147 = vmatpush.xpose.msra.mxu0 %v127
    %148 = vmatmul.f32.gmra.mxu0 %v124
    %v149 = vpop.f32.mrf.mxu0
    %v150 = vadd.f32 0.0, %v149
    %151 = vdwg.mxu0
    %v152 = vperm.slane %v118, 0
    %v153 = vmul.f32 %v152, %v122
    %v154 = vmax.f32 %v153, 1e-16
    %v155 = vrsqrt.pop %v154
    %v156 = vmul.f32 %v155, %v154
    %v157 = vmul.f32 %v156, %v155
    %v158 = vmul.f32 0.5, %v157
    %v159 = vsub.f32 1.5, %v158
    %v160 = vmul.f32 %v155, %v159
    %vm161 = vweird.f32 %v154
    %vm162 = vweird.f32 %v155
    %vm163 = vmor %vm161, %vm162
    %v164 = vsel %vm163, %v155, %v160
    %v165 = vmul.f32 %v150, %v164
    %166 = vst.msk [vmem:[#allocation2] sm:$0xff] %vm17, %v165
    // Predicated region
    $region10: #{tpu_custom_call.1} parent=1 // pred_check
      _
    $region11: #{tpu_custom_call.1} parent=1 // pred_check_branch
      %168 = sbr.rel (0) target = $region13
    $region12: #{tpu_custom_call.1} parent=1 // pred_region
      %170 = vsyncadd [#allocation3], 0
      %s172 = sshll.u32 [#allocation2], 4
      %s173 = int_to_ptr.vmem [resolvable:$true] %s172
      %s174 = sshll.u32 %s2, 4
      %s175 = int_to_ptr.hbm [resolvable:$true] %s174
      %177 = dma.vmem_to_hbm [thread:$0]  %s173, 128, %s175, [#allocation3]
    $region13: #{tpu_custom_call.1} parent=1 // pred_fallthru
      _
    // Predicated region
    $region14: #{tpu_custom_call.1} parent=1 // pred_check
      _
    $region15: #{tpu_custom_call.1} parent=1 // pred_check_branch
      %179 = sbr.rel (0) target = $region17
    $region16: #{tpu_custom_call.1} parent=1 // pred_region
      %181 = dma.done [#allocation3], 128
    $region17: #{tpu_custom_call.1} parent=1 // pred_fallthru
      _
    %182 = vsyncpa [#allocation3], 1

</llo_original>
